<compile_context>
chip_gen: v7x
topology: tpu7x:2x2x1
jax: 0.10.0
libtpu: 0.0.40
codegen_flags: <defaults>
</compile_context>

<pallas_src>
import functools
import math

import jax
import jax.numpy as jnp
from jax.experimental import pallas as pl
from jax.experimental.pallas import tpu as pltpu

_LANE = 128
_SUBLANE = 8
_F32 = 4


def _round_up(x, m):
    return ((x + m - 1) // m) * m


def _lcm(a, b):
    return a * b // math.gcd(a, b)


def _vmem_capacity_bytes():
    """Physical VMEM per core; falls back to the smallest known size (v7x)."""
    try:
        v = int(getattr(pltpu.get_tpu_info(), "vmem_capacity_bytes", 0))
        if v > 0:
            return v
    except Exception:
        pass
    return 64 * 1024 * 1024


def _num_tensorcores():
    """TensorCores per chip (1 on v5e/v6e, 2 on v7x); defensive lookup."""
    try:
        info = pltpu.get_tpu_info()
        for attr in ("num_cores", "core_count", "num_tensorcores",
                     "tensor_cores_per_chip", "cores_per_chip"):
            v = getattr(info, attr, None)
            if v is not None:
                v = int(v)
                if 1 <= v <= 16:
                    return min(v, 2)
    except Exception:
        pass
    return 1


def _pick_fold_scores(d, rows, m):
    """Largest fold k with k*d lane-friendly, k | rows, and enough folded rows
    for one sublane-aligned metapath period.  Returns (k, unit_q)."""
    if d < _LANE and _LANE % d == 0:
        kmax = _LANE // d
        cands = [c for c in range(kmax, 0, -1) if kmax % c == 0]
    else:
        cands = [1]
    for k in cands:
        if rows % k:
            continue
        unit = _lcm(_SUBLANE, m // math.gcd(m, k))
        if rows // k >= unit:
            return k, unit
    return 1, _lcm(_SUBLANE, m)


def _pick_fold_combine(d, n):
    """Largest fold k with k*d lane-friendly and k | n (lane-dense stores)."""
    if d < _LANE and _LANE % d == 0:
        kmax = _LANE // d
        for k in (c for c in range(kmax, 0, -1) if kmax % c == 0):
            if n % k == 0:
                return k
    return 1


# ---------------------------------------------------------------------------
# Pass 1: grouped sums of tanh(z @ W1 + b1)  (w2 / mean / softmax in epilogue)
# ---------------------------------------------------------------------------
def _scores_kernel(zf_ref, w1k_ref, b1k_ref, psum_ref, *,
                   unit_q, valid_rows, n_tiles, tiles_per_chunk, irregular):
    """Accumulates sublane-grouped hidden sums for one chunk of folded rows.

    zf_ref  : (tile_q, k*D)     lane-dense block of k-folded flattened rows
    w1k_ref : (k*D, k*H)        block-diagonal W1 (k copies), resident
    b1k_ref : (1, k*H)          k-tiled bias, f32, resident
    psum_ref: (1, unit_q, k*H)  per-chunk partials; element (u, j*H:(j+1)*H)
              sums every folded row q == u (mod unit_q) in node-slot j; all of
              those share metapath (u*k + j) % M (folded back in the epilogue).
    """
    c = pl.program_id(0)          # chunk: one per TensorCore when available
    t = pl.program_id(1)          # sequential tile within the chunk

    @pl.when(t == 0)
    def _init():
        psum_ref[...] = jnp.zeros_like(psum_ref)

    tile_q = zf_ref.shape[0]
    groups = tile_q // unit_q

    def _accumulate(mask_tail):
        # Native-dtype MXU matmul (bf16 stays bf16), f32 accumulate, EUP tanh.
        h = jnp.tanh(
            jnp.dot(zf_ref[...], w1k_ref[...],
                    preferred_element_type=jnp.float32) + b1k_ref[...])
        if mask_tail:
            # Tail / phantom tile only: zero the contribution of rows past the
            # end (unspecified VMEM rows and the bias-only tanh(b1) offset).
            row0 = (c * tiles_per_chunk + t) * tile_q
            rows = row0 + jax.lax.broadcasted_iota(jnp.int32, (tile_q, 1), 0)
            h = jnp.where(rows < valid_rows, h, 0.0)
        # Sublane-aligned group sum (unit_q % 8 == 0 -> free relabel) on VPU.
        psum_ref[...] += h.reshape(groups, unit_q, h.shape[-1]).sum(axis=0)[None]

    if not irregular:
        _accumulate(False)            # hot path: no masking anywhere
    else:
        g = c * tiles_per_chunk + t
        is_tail = g >= n_tiles - 1

        @pl.when(jnp.logical_not(is_tail))
        def _hot():
            _accumulate(False)

        @pl.when(is_tail)
        def _tail():
            _accumulate(True)


# ---------------------------------------------------------------------------
# Pass 2: out[n, :] = sum_m beta[m] * z[n, m, :]   as a row-tiled matmul
# ---------------------------------------------------------------------------
def _combine_kernel(zin_ref, bk_ref, out_ref):
    x = zin_ref[...]
    if x.dtype != jnp.float32:
        # bk carries beta in f32 (exact attention weights); upcast z for MXU.
        x = x.astype(jnp.float32)
    out_ref[...] = jnp.dot(x, bk_ref[...],
                           preferred_element_type=jnp.float32).astype(out_ref.dtype)


def semantic_attention(z, w1, b1, w2, *,
                       tile_rows_scores=None, tile_rows_combine=None,
                       num_chunks=None):
    """HAN semantic attention forward: z (N, M, D) -> (N, D)."""
    N, M, D = z.shape
    H = w1.shape[1]
    isz = jnp.dtype(z.dtype).itemsize
    hp = jax.lax.Precision.HIGHEST

    # Chip-aware scoped-VMEM limit (~96 MiB on 128-MiB parts, 48 MiB on v7x)
    # and a per-pass working-set budget with headroom for compiler scratch.
    phys_vmem = _vmem_capacity_bytes()
    vmem_limit = min((phys_vmem * 3) // 4, 112 * 1024 * 1024)
    pass_budget = (vmem_limit * 2) // 3

    w1_f32 = w1.astype(jnp.float32)
    b1_f32 = b1.astype(jnp.float32).reshape(1, H)
    w2_f32 = w2.astype(jnp.float32).reshape(H)

    # -------------------- Pass 1: per-metapath logits -> beta --------------------
    R = N * M
    k1, unit_q = _pick_fold_scores(D, R, M)
    R2 = R // k1

    if R2 < unit_q:
        # Degenerate tiny input (< one sublane-aligned period): plain JAX.
        h = jnp.tanh(jnp.dot(z.reshape(R, D).astype(jnp.float32), w1_f32,
                             precision=hp) + b1_f32)
        logits = jnp.dot(h, w2_f32.reshape(H, 1),
                         precision=hp).reshape(N, M).mean(axis=0)
    else:
        kD, kH = k1 * D, k1 * H
        zf = z.reshape(R2, kD)                    # free collapse (k1 | N*M)
        # Block-diagonal W1 (k1 copies along the diagonal) and k1-tiled bias.
        w1k = (jnp.eye(k1, dtype=jnp.float32)[:, None, :, None]
               * w1_f32[None, :, None, :]).reshape(kD, kH)
        mxu_dtype = z.dtype if isz < 4 else jnp.float32
        w1k = w1k.astype(mxu_dtype)               # native MXU rate for bf16 z
        b1k = jnp.tile(b1_f32, (1, k1))           # (1, k1*H) f32

        # VMEM budget: resident operands (double-buffered) + per-row tile cost.
        lanes_in = _round_up(kD, _LANE)
        lanes_h = _round_up(kH, _LANE)
        resident = 2 * lanes_h * (
            _round_up(kD, _SUBLANE) * jnp.dtype(mxu_dtype).itemsize    # w1k
            + _SUBLANE * _F32                                          # b1k
            + _round_up(unit_q, _SUBLANE) * _F32)                      # psum blk
        per_row = 2 * lanes_in * isz + 2 * lanes_h * _F32   # zf x2 + h + temp
        avail = max(pass_budget - resident - (2 << 20), per_row * unit_q)
        if tile_rows_scores is not None:
            tile_q = max(unit_q, _round_up(tile_rows_scores, unit_q))
        else:
            tile_q = max(unit_q, (avail // per_row) // unit_q * unit_q)
        cap = R2 if R2 % unit_q == 0 else (R2 // unit_q) * unit_q
        tile_q = min(tile_q, cap)

        n_tiles = pl.cdiv(R2, tile_q)
        n_chunks = max(1, min(num_chunks if num_chunks is not None
                              else _num_tensorcores(), n_tiles))
        tiles_per_chunk = pl.cdiv(n_tiles, n_chunks)
        has_phantom = n_chunks * tiles_per_chunk != n_tiles
        irregular = has_phantom or (n_tiles * tile_q != R2)

        if has_phantom:
            def zf_map(c, t, _tpc=tiles_per_chunk, _last=n_tiles - 1):
                return (jnp.minimum(c * _tpc + t, _last), 0)
        else:
            def zf_map(c, t, _tpc=tiles_per_chunk):
                return (c * _tpc + t, 0)

        psums = pl.pallas_call(
            functools.partial(_scores_kernel, unit_q=unit_q, valid_rows=R2,
                              n_tiles=n_tiles, tiles_per_chunk=tiles_per_chunk,
                              irregular=irregular),
            out_shape=jax.ShapeDtypeStruct((n_chunks, unit_q, kH), jnp.float32),
            grid_spec=pltpu.PrefetchScalarGridSpec(
                num_scalar_prefetch=0,
                grid=(n_chunks, tiles_per_chunk),
                in_specs=[
                    pl.BlockSpec((tile_q, kD), zf_map),
                    pl.BlockSpec((kD, kH), lambda c, t: (0, 0)),
                    pl.BlockSpec((1, kH), lambda c, t: (0, 0)),
                ],
                out_specs=pl.BlockSpec((1, unit_q, kH), lambda c, t: (c, 0, 0)),
            ),
            compiler_params=pltpu.CompilerParams(
                # TODO(synk): on v7x verify the leading "parallel" axis really
                # shards across both TensorCores; otherwise switch it to
                # pltpu.CORE_PARALLEL / an explicit core_map.
                dimension_semantics=("parallel", "arbitrary"),
                vmem_limit_bytes=vmem_limit),
        )(zf, w1k, b1k)

        # Scalar-sized epilogue: fold (unit_q, k1) slots back onto metapaths,
        # apply w2 (the score is linear in h), mean over nodes.
        p = psums.sum(axis=0).reshape(unit_q, k1, H)
        mp = (jnp.arange(unit_q)[:, None] * k1 + jnp.arange(k1)[None, :]) % M
        onehot = (mp[..., None] == jnp.arange(M)).astype(jnp.float32)
        hsum = jnp.einsum("ukm,ukh->mh", onehot, p, precision=hp)        # (M, H)
        logits = jnp.einsum("mh,h->m", hsum, w2_f32, precision=hp) / jnp.float32(N)

    beta = jax.nn.softmax(logits)                 # (M,)

    # -------------------- Pass 2: beta-weighted combine --------------------
    k2 = _pick_fold_combine(D, N)                 # lane-dense output when D | 128
    rows2 = N // k2
    in_w, out_w = k2 * M * D, k2 * D
    zin = z.reshape(rows2, in_w)                  # free collapse (k2 | N)
    # bk[(i*M+m)*D+d, i*D+d] = beta[m]; kept in f32 so low-precision z never
    # quantizes the attention weights.
    bk = (jnp.eye(k2, dtype=jnp.float32)[:, None, None, :, None]
          * beta[None, :, None, None, None]
          * jnp.eye(D, dtype=jnp.float32)[None, None, :, None, :]
          ).reshape(in_w, out_w)

    lanes_in2 = _round_up(in_w, _LANE)
    lanes_out2 = _round_up(out_w, _LANE)
    resident2 = 2 * _F32 * _round_up(in_w, _SUBLANE) * lanes_out2          # bk
    per_row2 = (2 * lanes_in2 * isz
                + (lanes_in2 * _F32 if z.dtype != jnp.float32 else 0)
                + 2 * lanes_out2 * isz + lanes_out2 * _F32)
    avail2 = max(pass_budget - resident2 - (2 << 20), per_row2 * _SUBLANE)
    if tile_rows_combine is not None:
        tile2 = max(_SUBLANE, _round_up(tile_rows_combine, _SUBLANE))
    else:
        tile2 = max(_SUBLANE, (avail2 // per_row2) // _SUBLANE * _SUBLANE)
    if tile2 >= rows2:
        tile2 = rows2                              # single full block is legal

    out2 = pl.pallas_call(
        _combine_kernel,
        out_shape=jax.ShapeDtypeStruct((rows2, out_w), z.dtype),
        grid_spec=pltpu.PrefetchScalarGridSpec(
            num_scalar_prefetch=0,
            grid=(pl.cdiv(rows2, tile2),),
            in_specs=[
                pl.BlockSpec((tile2, in_w), lambda i: (i, 0)),
                pl.BlockSpec((in_w, out_w), lambda i: (0, 0)),
            ],
            out_specs=pl.BlockSpec((tile2, out_w), lambda i: (i, 0)),
        ),
        compiler_params=pltpu.CompilerParams(
            dimension_semantics=("parallel",),
            vmem_limit_bytes=vmem_limit),
    )(zin, bk)
    return out2.reshape(N, D)


def semantic_attention_ref(z, w1, b1, w2):
    """Pure-JAX reference mirroring the PyTorch module."""
    hp = jax.lax.Precision.HIGHEST
    h = jnp.tanh(jnp.einsum("nmd,dh->nmh", z, w1, precision=hp) + b1)   # (N, M, H)
    s = jnp.einsum("nmh,ho->nmo", h, w2, precision=hp)                  # (N, M, 1)
    w = s.mean(axis=0)                                                  # (M, 1)
    beta = jax.nn.softmax(w, axis=0)                                    # (M, 1)
    return (beta[None, :, :] * z).sum(axis=1)                           # (N, D)


if __name__ == "__main__":
    def run_case(N, M, in_size, hidden, case, **kwargs):
        key = jax.random.fold_in(jax.random.PRNGKey(0), case)
        kz, kw1, kb1, kw2 = jax.random.split(key, 4)
        z = jax.random.normal(kz, (N, M, in_size), dtype=jnp.float32)
        lim1 = 1.0 / (in_size ** 0.5)
        w1 = jax.random.uniform(kw1, (in_size, hidden), jnp.float32, -lim1, lim1)
        b1 = jax.random.uniform(kb1, (hidden,), jnp.float32, -lim1, lim1)
        lim2 = 1.0 / (hidden ** 0.5)
        w2 = jax.random.uniform(kw2, (hidden, 1), jnp.float32, -lim2, lim2)

        out = jax.block_until_ready(semantic_attention(z, w1, b1, w2, **kwargs))
        ref = semantic_attention_ref(z, w1, b1, w2)
        assert out.shape == (N, in_size)
        err = jnp.max(jnp.abs(out - ref))
        assert jnp.allclose(out, ref, atol=1e-5, rtol=1e-5), f"mismatch (max err {err})"
        return out

    # Main case: lane-dense folded pass 1 (k1 = 8) and combine (k2 = 8).
    run_case(N=64, M=4, in_size=16, hidden=32, case=0)
    # Ragged / chunked case: k=1 fallback, forced 2 chunks, masked tail tile in
    # pass 1 and a partial output block in pass 2.
    run_case(N=13, M=4, in_size=20, hidden=24, case=1,
             tile_rows_scores=16, tile_rows_combine=8, num_chunks=2)

    print("KERNEL_OK")
</pallas_src>

<mosaic_0001>
module attributes {stable_mosaic.version = 11 : i64} {
  func.func @_scores_kernel(%arg0: i32, %arg1: i32, %arg2: memref<32x128xf32, #tpu.memory_space<vmem>>, %arg3: memref<128x256xf32, #tpu.memory_space<vmem>>, %arg4: memref<1x256xf32, #tpu.memory_space<vmem>>, %arg5: memref<1x8x256xf32, #tpu.memory_space<vmem>>) attributes {dimension_semantics = [#tpu.dimension_semantics<parallel>, #tpu.dimension_semantics<arbitrary>], iteration_bounds = array<i64: 1, 1>, scalar_prefetch = 0 : i64, scratch_operands = 0 : i64, tpu.core_type = #tpu.core_type<tc>, window_params = [{transform_indices = @transform_0, window_bounds = array<i64: 32, 128>}, {pipeline_mode = #tpu.pipeline_mode<synchronous>, transform_indices = @transform_1, window_bounds = array<i64: 128, 256>}, {pipeline_mode = #tpu.pipeline_mode<synchronous>, transform_indices = @transform_2, window_bounds = array<i64: 1, 256>}, {transform_indices = @transform_3, window_bounds = array<i64: 1, 8, 256>}]} {
    %c0_i32 = arith.constant 0 : i32
    %0 = arith.cmpi eq, %arg1, %c0_i32 : i32
    %1 = arith.extui %0 : i1 to i32
    %c0_i32_0 = arith.constant 0 : i32
    %2 = arith.cmpi ne, %1, %c0_i32_0 : i32
    scf.if %2 {
      %cst_13 = arith.constant 0.000000e+00 : f32
      %16 = vector.broadcast %cst_13 : f32 to vector<1x8x256xf32>
      %c0_14 = arith.constant 0 : index
      %c0_15 = arith.constant 0 : index
      %c0_16 = arith.constant 0 : index
      %17 = vector.load %arg5[%c0_14, %c0_15, %c0_16] : memref<1x8x256xf32, #tpu.memory_space<vmem>>, vector<1x8x256xf32>
      tpu.vector_store %arg5[%c0_14, %c0_15, %c0_16], %16 {strides = array<i32>} : memref<1x8x256xf32, #tpu.memory_space<vmem>>, vector<1x8x256xf32>,
    } else {
    }
    %c0 = arith.constant 0 : index
    %c0_1 = arith.constant 0 : index
    %3 = vector.load %arg2[%c0, %c0_1] : memref<32x128xf32, #tpu.memory_space<vmem>>, vector<32x128xf32>
    %c0_2 = arith.constant 0 : index
    %c0_3 = arith.constant 0 : index
    %4 = vector.load %arg3[%c0_2, %c0_3] : memref<128x256xf32, #tpu.memory_space<vmem>>, vector<128x256xf32>
    %cst = arith.constant dense<0.000000e+00> : vector<32x256xf32>
    %5 = tpu.matmul %3, %4, %cst {dimension_numbers = #tpu.dot_dimension_numbers<[1], [0], [0], [1], [0, 0, 1, 1], [], []>} : vector<32x128xf32>, vector<128x256xf32>, vector<32x256xf32> -> vector<32x256xf32>
    %c0_4 = arith.constant 0 : index
    %c0_5 = arith.constant 0 : index
    %6 = vector.load %arg4[%c0_4, %c0_5] : memref<1x256xf32, #tpu.memory_space<vmem>>, vector<1x256xf32>
    %7 = vector.broadcast %6 : vector<1x256xf32> to vector<32x256xf32>
    %8 = arith.addf %5, %7 : vector<32x256xf32>
    %9 = math.tanh %8 : vector<32x256xf32>
    %c0_6 = arith.constant 0 : index
    %c0_7 = arith.constant 0 : index
    %c0_8 = arith.constant 0 : index
    %10 = vector.load %arg5[%c0_6, %c0_7, %c0_8] : memref<1x8x256xf32, #tpu.memory_space<vmem>>, vector<1x8x256xf32>
    %11 = vector.shape_cast %9 : vector<32x256xf32> to vector<4x8x256xf32>
    %cst_9 = arith.constant dense<0.000000e+00> : vector<8x256xf32>
    %12 = vector.multi_reduction <add>, %11, %cst_9 [0] : vector<4x8x256xf32> to vector<8x256xf32>
    %13 = vector.shape_cast %12 : vector<8x256xf32> to vector<1x8x256xf32>
    %14 = arith.addf %10, %13 : vector<1x8x256xf32>
    %c0_10 = arith.constant 0 : index
    %c0_11 = arith.constant 0 : index
    %c0_12 = arith.constant 0 : index
    %15 = vector.load %arg5[%c0_10, %c0_11, %c0_12] : memref<1x8x256xf32, #tpu.memory_space<vmem>>, vector<1x8x256xf32>
    tpu.vector_store %arg5[%c0_10, %c0_11, %c0_12], %14 {strides = array<i32>} : memref<1x8x256xf32, #tpu.memory_space<vmem>>, vector<1x8x256xf32>,
    return
  }
  func.func @transform_0(%arg0: i32, %arg1: i32) -> (i32, i32) {
    %c1_i32 = arith.constant 1 : i32
    %0 = arith.muli %arg0, %c1_i32 : i32
    %1 = arith.addi %0, %arg1 : i32
    %c0_i32 = arith.constant 0 : i32
    %c0_i32_0 = arith.constant 0 : i32
    return %1, %c0_i32 : i32, i32
  }
  func.func @transform_1(%arg0: i32, %arg1: i32) -> (i32, i32) {
    %c0_i32 = arith.constant 0 : i32
    %c0_i32_0 = arith.constant 0 : i32
    %c0_i32_1 = arith.constant 0 : i32
    return %c0_i32, %c0_i32_0 : i32, i32
  }
  func.func @transform_2(%arg0: i32, %arg1: i32) -> (i32, i32) {
    %c0_i32 = arith.constant 0 : i32
    %c0_i32_0 = arith.constant 0 : i32
    %c0_i32_1 = arith.constant 0 : i32
    return %c0_i32, %c0_i32_0 : i32, i32
  }
  func.func @transform_3(%arg0: i32, %arg1: i32) -> (i32, i32, i32) {
    %c0_i32 = arith.constant 0 : i32
    %c0_i32_0 = arith.constant 0 : i32
    %c0_i32_1 = arith.constant 0 : i32
    return %arg0, %c0_i32, %c0_i32_0 : i32, i32, i32
  }
}

</mosaic_0001>

<llo_original>
// kernel: tpu_custom_call.1
$region0: #{tpu_custom_call.1}
  #allocation0 [shape = 'u32[]', space=smem, size = 0x4, offset = 0x4, fixed_abs, tag = 'smem constant byte address 0x4 - core index']
  #allocation1 [shape = 'u32[144,128]{1,0:T(1,128)}', space=vmem, size = 0x12000, scoped, tag = 'internal scratch']
  %s0 = inlined_call_operand.hbm [shape: f32[32,128], index: 0, kind: input, shape index: {}]
  %s1 = inlined_call_operand.hbm [shape: f32[128,256], index: 1, kind: input, shape index: {}]
  %s2 = inlined_call_operand.vmem [shape: f32[1,256], index: 2, kind: input, shape index: {}]
  %s3 = inlined_call_operand.hbm [shape: f32[1,8,256], index: 3, kind: output, shape index: {}]
  %s4 = sld [smem:[#allocation0]]
  $region34: #{tpu_custom_call.1} parent=0
    _
  %s6 = ssub.s32 1, %s4
  %s7 = scalar_select 0, %s6, %s4
  $region1: #{tpu_custom_call.1} parent=0
    #allocation2 [shape = 'u8[16384]{0}', space=vmem, size = 0x4000, scoped, tag = 'input window, operand 0, single buffered']
    #allocation3 [shape = 's32[1]{0}', space=sflag, size = 0x4, scoped, tag = 'scoped memory for tpu_custom_call.1']
    #allocation4 [shape = 's32[1]{0}', space=sflag, size = 0x4, scoped, tag = 'scoped memory for tpu_custom_call.1']
    #allocation5 [shape = 'u8[131072]{0}', space=vmem, size = 0x20000, scoped, tag = 'input window, operand 1, single buffered']
    #allocation6 [shape = 's32[1]{0}', space=sflag, size = 0x4, scoped, tag = 'scoped memory for tpu_custom_call.1']
    #allocation7 [shape = 'u8[8192]{0}', space=vmem, size = 0x2000, scoped, tag = 'output window, operand 0, single buffered']
    %8 = vsyncpa [#allocation3], 0
    %9 = vsyncpa [#allocation6], 0
    %10 = vsyncpa [#allocation4], 0
    // Predicated region
    $region2: #{tpu_custom_call.1} parent=1 // pred_check
      _
    $region3: #{tpu_custom_call.1} parent=1 // pred_check_branch
      %12 = sbr.rel (0) target = $region5
    $region4: #{tpu_custom_call.1} parent=1 // pred_region
      %s13 = sadd.s32 0, 0
      %s14 = smul.u32 4, %s13
      %s16 = ssub.s32 512, 512
      %17 = vsyncadd [#allocation3], %s16
      %s18 = smul.addr %s14, 128
      %s19 = scalar_lea.hbm %s0, %s18
      %s20 = sshll.u32 [#allocation2], 4
      %s21 = int_to_ptr.vmem [resolvable:$true] %s20
      %26 = dma.hbm_to_vmem [thread:$0]  %s19, 512, %s21, [#allocation3], 128, 128, 8
    $region5: #{tpu_custom_call.1} parent=1 // pred_fallthru
      _
    // Predicated region
    $region6: #{tpu_custom_call.1} parent=1 // pred_check
      _
    $region7: #{tpu_custom_call.1} parent=1 // pred_check_branch
      %28 = sbr.rel (0) target = $region9
    $region8: #{tpu_custom_call.1} parent=1 // pred_region
      %s30 = ssub.s32 4096, 4096
      %31 = vsyncadd [#allocation6], %s30
      %s32 = sshll.u32 [#allocation5], 4
      %s33 = int_to_ptr.vmem [resolvable:$true] %s32
      %38 = dma.hbm_to_vmem [thread:$0]  %s1, 4096, %s33, [#allocation6], 256, 256, 16
    $region9: #{tpu_custom_call.1} parent=1 // pred_fallthru
      _
    // Predicated region
    $region10: #{tpu_custom_call.1} parent=1 // pred_check
      _
    $region11: #{tpu_custom_call.1} parent=1 // pred_check_branch
      %40 = sbr.rel (0) target = $region13
    $region12: #{tpu_custom_call.1} parent=1 // pred_region
      _
    $region13: #{tpu_custom_call.1} parent=1 // pred_fallthru
      _
    // Predicated region
    $region14: #{tpu_custom_call.1} parent=1 // pred_check
      _
    $region15: #{tpu_custom_call.1} parent=1 // pred_check_branch
      %42 = sbr.rel (0) target = $region17
    $region16: #{tpu_custom_call.1} parent=1 // pred_region
      %43 = dma.done [#allocation3], 512
    $region17: #{tpu_custom_call.1} parent=1 // pred_fallthru
      _
    // Predicated region
    $region18: #{tpu_custom_call.1} parent=1 // pred_check
      _
    $region19: #{tpu_custom_call.1} parent=1 // pred_check_branch
      %45 = sbr.rel (0) target = $region21
    $region20: #{tpu_custom_call.1} parent=1 // pred_region
      %46 = dma.done [#allocation6], 4096
    $region21: #{tpu_custom_call.1} parent=1 // pred_fallthru
      _
    %s47 = sadd.s32 0, 0
    %s48 = smul.u32 4, %s47
    %p49 = scmp.eq.s32.totalorder 0, 0
    // Predicated region
    $region22: #{tpu_custom_call.1} parent=1 // pred_check
      %p50 = pneg %p49
    $region23: #{tpu_custom_call.1} parent=1 // pred_check_branch
      %52 = sbr.rel (%p50) target = $region25
    $region24: #{tpu_custom_call.1} parent=1 // pred_region
      %53 = vst [vmem:[#allocation7] sm:$0xff] 0.0
      %54 = vst [vmem:[#allocation7 + $0x8] sm:$0xff] 0.0
    $region25: #{tpu_custom_call.1} parent=1 // pred_fallthru
      _
    %v55 = vld [vmem:[#allocation2] sm:$0xff]
    %v56 = vld [vmem:[#allocation2 + $0x8] sm:$0xff]
    %v57 = vld [vmem:[#allocation2 + $0x10] sm:$0xff]
    %v58 = vld [vmem:[#allocation2 + $0x18] sm:$0xff]
    %v59 = vld [vmem:[#allocation5] sm:$0xff]
    %v60 = vld [vmem:[#allocation5 + $0x8] sm:$0xff]
    %v61 = vld [vmem:[#allocation5 + $0x10] sm:$0xff]
    %v62 = vld [vmem:[#allocation5 + $0x18] sm:$0xff]
    %v63 = vld [vmem:[#allocation5 + $0x20] sm:$0xff]
    %v64 = vld [vmem:[#allocation5 + $0x28] sm:$0xff]
    %v65 = vld [vmem:[#allocation5 + $0x30] sm:$0xff]
    %v66 = vld [vmem:[#allocation5 + $0x38] sm:$0xff]
    %v67 = vld [vmem:[#allocation5 + $0x40] sm:$0xff]
    %v68 = vld [vmem:[#allocation5 + $0x48] sm:$0xff]
    %v69 = vld [vmem:[#allocation5 + $0x50] sm:$0xff]
    %v70 = vld [vmem:[#allocation5 + $0x58] sm:$0xff]
    %v71 = vld [vmem:[#allocation5 + $0x60] sm:$0xff]
    %v72 = vld [vmem:[#allocation5 + $0x68] sm:$0xff]
    %v73 = vld [vmem:[#allocation5 + $0x70] sm:$0xff]
    %v74 = vld [vmem:[#allocation5 + $0x78] sm:$0xff]
    %v75 = vld [vmem:[#allocation5 + $0x80] sm:$0xff]
    %v76 = vld [vmem:[#allocation5 + $0x88] sm:$0xff]
    %v77 = vld [vmem:[#allocation5 + $0x90] sm:$0xff]
    %v78 = vld [vmem:[#allocation5 + $0x98] sm:$0xff]
    %v79 = vld [vmem:[#allocation5 + $0xa0] sm:$0xff]
    %v80 = vld [vmem:[#allocation5 + $0xa8] sm:$0xff]
    %v81 = vld [vmem:[#allocation5 + $0xb0] sm:$0xff]
    %v82 = vld [vmem:[#allocation5 + $0xb8] sm:$0xff]
    %v83 = vld [vmem:[#allocation5 + $0xc0] sm:$0xff]
    %v84 = vld [vmem:[#allocation5 + $0xc8] sm:$0xff]
    %v85 = vld [vmem:[#allocation5 + $0xd0] sm:$0xff]
    %v86 = vld [vmem:[#allocation5 + $0xd8] sm:$0xff]
    %v87 = vld [vmem:[#allocation5 + $0xe0] sm:$0xff]
    %v88 = vld [vmem:[#allocation5 + $0xe8] sm:$0xff]
    %v89 = vld [vmem:[#allocation5 + $0xf0] sm:$0xff]
    %v90 = vld [vmem:[#allocation5 + $0xf8] sm:$0xff]
    %v91 = vld [vmem:[%s2] sm:$0x3]
    %v93 = vlaneseq
    %v94 = vshrl.u32 %v93, 7
    %v95 = vsub.s32 0, %v94
    %v96 = vrot.slane %v91, %v95
    %v97 = vlaneseq
    %v98 = vshrl.u32 %v97, 7
    %v99 = vsub.s32 1, %v98
    %v100 = vrot.slane %v91, %v99
    %103 = vmatprep.subr.mxu0 %v60
    %104 = vmatpush1.msra.mxu0 %v59
    %105 = vmatprep.subr.mxu0 %v62
    %106 = vmatpush1.msra.mxu0 %v61
    %107 = vmatprep.subr.mxu0 %v64
    %108 = vmatpush1.msra.mxu0 %v63
    %109 = vmatprep.subr.mxu0 %v66
    %110 = vmatpush1.msra.mxu0 %v65
    %111 = vmatprep.subr.mxu0 %v68
    %112 = vmatpush1.msra.mxu0 %v67
    %113 = vmatprep.subr.mxu0 %v70
    %114 = vmatpush1.msra.mxu0 %v69
    %115 = vmatprep.subr.mxu0 %v72
    %116 = vmatpush1.msra.mxu0 %v71
    %117 = vmatprep.subr.mxu0 %v74
    %118 = vmatpush1.msra.mxu0 %v73
    %119 = vmatprep.subr.mxu0 %v76
    %120 = vmatpush1.msra.mxu0 %v75
    %121 = vmatprep.subr.mxu0 %v78
    %122 = vmatpush1.msra.mxu0 %v77
    %123 = vmatprep.subr.mxu0 %v80
    %124 = vmatpush1.msra.mxu0 %v79
    %125 = vmatprep.subr.mxu0 %v82
    %126 = vmatpush1.msra.mxu0 %v81
    %127 = vmatprep.subr.mxu0 %v84
    %128 = vmatpush1.msra.mxu0 %v83
    %129 = vmatprep.subr.mxu0 %v86
    %130 = vmatpush1.msra.mxu0 %v85
    %131 = vmatprep.subr.mxu0 %v88
    %132 = vmatpush1.msra.mxu0 %v87
    %133 = vmatprep.subr.mxu0 %v90
    %134 = vmatpush1.msra.mxu0 %v89
    %135 = vmatprep.subr.mxu0 0.0
    %136 = vmatpush1.msra.mxu0 0.0
    %137 = vmatprep.subr.mxu0 0.0
    %138 = vmatpush1.msra.mxu0 0.0
    %139 = vmatprep.subr.mxu0 0.0
    %140 = vmatpush1.msra.mxu0 0.0
    %141 = vmatprep.subr.mxu0 0.0
    %142 = vmatpush1.msra.mxu0 0.0
    %143 = vmatprep.subr.mxu0 0.0
    %144 = vmatpush1.msra.mxu0 0.0
    %145 = vmatprep.subr.mxu0 0.0
    %146 = vmatpush1.msra.mxu0 0.0
    %147 = vmatprep.subr.mxu0 0.0
    %148 = vmatpush1.msra.mxu0 0.0
    %149 = vmatprep.subr.mxu0 0.0
    %150 = vmatpush1.msra.mxu0 0.0
    %151 = vmatprep.subr.mxu0 0.0
    %152 = vmatpush1.msra.mxu0 0.0
    %153 = vmatprep.subr.mxu0 0.0
    %154 = vmatpush1.msra.mxu0 0.0
    %155 = vmatprep.subr.mxu0 0.0
    %156 = vmatpush1.msra.mxu0 0.0
    %157 = vmatprep.subr.mxu0 0.0
    %158 = vmatpush1.msra.mxu0 0.0
    %159 = vmatprep.subr.mxu0 0.0
    %160 = vmatpush1.msra.mxu0 0.0
    %161 = vmatprep.subr.mxu0 0.0
    %162 = vmatpush1.msra.mxu0 0.0
    %163 = vmatprep.subr.mxu0 0.0
    %164 = vmatpush1.msra.mxu0 0.0
    %165 = vmatprep.subr.mxu0 0.0
    %166 = vmatpush1.msra.mxu0 0.0
    %167 = vmatprep.mubr.f32.mxu0 0.0
    %168 = vmatmul.mubr.f32.gmra.mrb[0].mxu0 %v55
    %v169 = vpop.f32.mrb[0].mxu0
    %v170 = vadd.f32 %v96, %v169
    %v171 = vpop.f32.mrb[0].mxu0
    %v172 = vadd.f32 %v100, %v171
    %173 = vmatprep.mubr.f32.mxu0 0.0
    %174 = vmatmul.mubr.f32.gmra.mrb[0].mxu0 %v56
    %v175 = vpop.f32.mrb[0].mxu0
    %v176 = vadd.f32 %v96, %v175
    %v177 = vpop.f32.mrb[0].mxu0
    %v178 = vadd.f32 %v100, %v177
    %179 = vmatprep.mubr.f32.mxu0 0.0
    %180 = vmatmul.mubr.f32.gmra.mrb[0].mxu0 %v57
    %v181 = vpop.f32.mrb[0].mxu0
    %v182 = vadd.f32 %v96, %v181
    %v183 = vpop.f32.mrb[0].mxu0
    %v184 = vadd.f32 %v100, %v183
    %185 = vmatprep.mubr.f32.mxu0 0.0
    %186 = vmatmul.mubr.f32.gmra.mrb[0].mxu0 %v58
    %v187 = vpop.f32.mrb[0].mxu0
    %v188 = vadd.f32 %v96, %v187
    %v189 = vpop.f32.mrb[0].mxu0
    %v190 = vadd.f32 %v100, %v189
    %191 = vdwg.mxu0
    %v192 = vtanh.pop %v170
    %v193 = vtanh.pop %v172
    %v194 = vtanh.pop %v176
    %v195 = vtanh.pop %v178
    %v196 = vtanh.pop %v182
    %v197 = vtanh.pop %v184
    %v198 = vtanh.pop %v188
    %v199 = vtanh.pop %v190
    %v200 = vld [vmem:[#allocation7] sm:$0xff]
    %v201 = vld [vmem:[#allocation7 + $0x8] sm:$0xff]
    %v202 = vadd.f32 %v192, %v194
    %v203 = vadd.f32 %v202, %v196
    %v204 = vadd.f32 %v203, %v198
    %v205 = vadd.f32 %v193, %v195
    %v206 = vadd.f32 %v205, %v197
    %v207 = vadd.f32 %v206, %v199
    %v208 = vadd.f32 %v200, %v204
    %v209 = vadd.f32 %v201, %v207
    %210 = vst [vmem:[#allocation7] sm:$0xff] %v208
    %211 = vst [vmem:[#allocation7 + $0x8] sm:$0xff] %v209
    // Predicated region
    $region26: #{tpu_custom_call.1} parent=1 // pred_check
      _
    $region27: #{tpu_custom_call.1} parent=1 // pred_check_branch
      %213 = sbr.rel (0) target = $region29
    $region28: #{tpu_custom_call.1} parent=1 // pred_region
      %s215 = ssub.s32 256, 256
      %216 = vsyncadd [#allocation4], %s215
      %s218 = sshll.u32 [#allocation7], 4
      %s219 = int_to_ptr.vmem [resolvable:$true] %s218
      %221 = dma.vmem_to_hbm [thread:$0]  %s219, 256, %s3, [#allocation4]
    $region29: #{tpu_custom_call.1} parent=1 // pred_fallthru
      _
    // Predicated region
    $region30: #{tpu_custom_call.1} parent=1 // pred_check
      _
    $region31: #{tpu_custom_call.1} parent=1 // pred_check_branch
      %223 = sbr.rel (0) target = $region33
    $region32: #{tpu_custom_call.1} parent=1 // pred_region
      %224 = dma.done [#allocation4], 256
    $region33: #{tpu_custom_call.1} parent=1 // pred_fallthru
      _
    %225 = vsyncpa [#allocation3], 1
    %226 = vsyncpa [#allocation6], 1
    %227 = vsyncpa [#allocation4], 1

</llo_original>
